<compile_context>
chip_gen: v7x
topology: tpu7x:2x2x1
jax: 0.10.0
libtpu: 0.0.40
codegen_flags: <defaults>
</compile_context>

<pallas_src>
import functools

import jax
import jax.numpy as jnp
import numpy as np
from jax.experimental import pallas as pl
from jax.experimental.pallas import tpu as pltpu

EPS = 1e-5


def resblock_kernel(x_ref, w1_ref, g1_ref, b1_ref, w2_ref, g2_ref, b2_ref,
                    out_ref, *, L):
    # x_ref  : (C, N*L)      f32, VMEM   channel-major, lane position p = n*L + l
    # w*_ref : (Cout, Cin*3) f32, VMEM   column j = ci*3 + k  == torch weight[co, ci, k]
    # g*/b*  : (Cout, 1)     f32, VMEM   per-channel affine (broadcast along lanes)
    # out_ref: (Cout, N*L)   f32, VMEM
    C, NL = x_ref.shape
    inv_count = 1.0 / float(NL)

    # Hoisted once: lane positions and per-sample zero-padding boundary masks
    # (shared by both convs and all channels).
    lane = jax.lax.broadcasted_iota(jnp.int32, (C, NL), 1)
    pos = lane % L
    left_edge = pos == 0          # x[l-1] does not exist
    right_edge = pos == (L - 1)   # x[l+1] does not exist

    def taps3(slab):
        # slab: (C, NL).  Returns (x[l-1], x[l], x[l+1]) with per-sample zero
        # padding, built from XLU rolls + hoisted lane masks (no padded buffer).
        left = jnp.where(left_edge, 0.0, pltpu.roll(slab, shift=1, axis=1))
        right = jnp.where(right_edge, 0.0, pltpu.roll(slab, shift=NL - 1, axis=1))
        return (left, slab, right)

    def conv_bn(slab, w_ref, g_ref, b_ref, *, relu, residual=None):
        # 3-tap conv over L (zero-pad 1) vectorized over channels: each (ci, k)
        # contributes one broadcast FMA (Cout,1)*(1,NL) producing all Cout rows.
        cin = slab.shape[0]
        w = w_ref[...]                                  # (Cout, Cin*3), loaded once
        cout = w.shape[0]
        taps = taps3(slab)                              # 3 x (Cin, NL)
        acc = jnp.zeros((cout, NL), jnp.float32)
        for ci in range(cin):
            for k in range(3):
                j = ci * 3 + k
                wcol = w[:, j:j + 1]                    # (Cout, 1)  lane broadcast
                trow = taps[k][ci:ci + 1, :]            # (1, NL)    sublane broadcast
                acc = acc + wcol * trow
        # Training-mode BatchNorm over N*L per channel (centered stats, var >= 0).
        mean = jnp.sum(acc, axis=1, keepdims=True) * inv_count
        centered = acc - mean
        var = jnp.sum(centered * centered, axis=1, keepdims=True) * inv_count
        y = centered * jax.lax.rsqrt(var + EPS) * g_ref[...] + b_ref[...]
        if residual is not None:
            y = y + residual
        if relu:
            y = jnp.maximum(y, 0.0)
        return y

    x = x_ref[...]                                      # one full-slab load
    h = conv_bn(x, w1_ref, g1_ref, b1_ref, relu=True)
    out_ref[...] = conv_bn(h, w2_ref, g2_ref, b2_ref, relu=True, residual=x)


def residual_block(x_ncl, w1, g1, b1, w2, g2, b2):
    """x_ncl: (N, C, L) like PyTorch.  Weights in PyTorch layout (Cout, Cin, 3)."""
    N, Cin, L = x_ncl.shape
    Cout = w1.shape[0]
    assert Cin == Cout, "this ResidualBlock config has no downsample (Cin == Cout)"

    # Channel-major, lane-dense repack (cheap wrapper layout plumbing).
    x = jnp.transpose(x_ncl.astype(jnp.float32), (1, 0, 2)).reshape(Cin, N * L)
    w1v = w1.reshape(Cout, Cin * 3).astype(jnp.float32)     # [co, ci*3 + k]
    w2v = w2.reshape(Cout, Cout * 3).astype(jnp.float32)
    g1v = g1.astype(jnp.float32).reshape(Cout, 1)
    b1v = b1.astype(jnp.float32).reshape(Cout, 1)
    g2v = g2.astype(jnp.float32).reshape(Cout, 1)
    b2v = b2.astype(jnp.float32).reshape(Cout, 1)

    vmem = pl.BlockSpec(memory_space=pltpu.MemorySpace.VMEM)
    cost = pl.CostEstimate(
        flops=2 * (2 * 3 * Cin * Cout * N * L) + 10 * Cout * N * L,
        transcendentals=2 * Cout,
        bytes_accessed=4 * (2 * Cin * N * L + 2 * 3 * Cin * Cout + 4 * Cout),
    )

    out = pl.pallas_call(
        functools.partial(resblock_kernel, L=L),
        out_shape=jax.ShapeDtypeStruct((Cout, N * L), jnp.float32),
        in_specs=[vmem] * 7,
        out_specs=vmem,
        cost_estimate=cost,
    )(x, w1v, g1v, b1v, w2v, g2v, b2v)

    return jnp.transpose(out.reshape(Cout, N, L), (1, 0, 2))


def residual_block_ref(x_ncl, w1, g1, b1, w2, g2, b2):
    """Pure-JAX reference (matches PyTorch training-mode forward)."""
    def conv1d(x, w):  # x: (N, C, L), w: (Cout, Cin, 3), pad=1
        return jax.lax.conv_general_dilated(
            x, w, window_strides=(1,), padding=((1, 1),),
            dimension_numbers=("NCH", "OIH", "NCH"))

    def bn(x, g, b):
        mean = jnp.mean(x, axis=(0, 2), keepdims=True)
        var = jnp.mean((x - mean) ** 2, axis=(0, 2), keepdims=True)
        return (x - mean) / jnp.sqrt(var + EPS) * g[None, :, None] + b[None, :, None]

    out = jnp.maximum(bn(conv1d(x_ncl, w1), g1, b1), 0.0)
    out = bn(conv1d(out, w2), g2, b2)
    return jnp.maximum(out + x_ncl, 0.0)


if __name__ == "__main__":
    N, C, L = 2, 4, 16  # in_channels == out_channels, stride=1, downsample=None
    key = jax.random.PRNGKey(0)
    kx, kw1, kw2, kg1, kb1, kg2, kb2 = jax.random.split(key, 7)

    x = jax.random.normal(kx, (N, C, L), dtype=jnp.float32)
    scale = 1.0 / np.sqrt(C * 3)
    w1 = jax.random.normal(kw1, (C, C, 3), dtype=jnp.float32) * scale
    w2 = jax.random.normal(kw2, (C, C, 3), dtype=jnp.float32) * scale
    g1 = 1.0 + 0.1 * jax.random.normal(kg1, (C,), dtype=jnp.float32)
    b1 = 0.1 * jax.random.normal(kb1, (C,), dtype=jnp.float32)
    g2 = 1.0 + 0.1 * jax.random.normal(kg2, (C,), dtype=jnp.float32)
    b2 = 0.1 * jax.random.normal(kb2, (C,), dtype=jnp.float32)

    out = jax.block_until_ready(residual_block(x, w1, g1, b1, w2, g2, b2))
    ref = jax.block_until_ready(residual_block_ref(x, w1, g1, b1, w2, g2, b2))
    np.testing.assert_allclose(np.asarray(out), np.asarray(ref), rtol=1e-4, atol=1e-4)
    print("KERNEL_OK")
</pallas_src>

<mosaic_0001>
module attributes {stable_mosaic.version = 11 : i64} {
  func.func @resblock_kernel(%arg0: memref<4x32xf32, #tpu.memory_space<vmem>>, %arg1: memref<4x12xf32, #tpu.memory_space<vmem>>, %arg2: memref<4x1xf32, #tpu.memory_space<vmem>>, %arg3: memref<4x1xf32, #tpu.memory_space<vmem>>, %arg4: memref<4x12xf32, #tpu.memory_space<vmem>>, %arg5: memref<4x1xf32, #tpu.memory_space<vmem>>, %arg6: memref<4x1xf32, #tpu.memory_space<vmem>>, %arg7: memref<4x32xf32, #tpu.memory_space<vmem>>) attributes {dimension_semantics = [], scalar_prefetch = 0 : i64, scratch_operands = 0 : i64, tpu.core_type = #tpu.core_type<tc>} {
    %0 = tpu.iota {dimensions = array<i32: 1>} : vector<4x32xi32>
    %c16_i32 = arith.constant 16 : i32
    %c0_i32 = arith.constant 0 : i32
    %1 = arith.cmpi eq, %c16_i32, %c0_i32 : i32
    %c1_i32 = arith.constant 1 : i32
    %2 = arith.select %1, %c1_i32, %c16_i32 : i32
    %3 = vector.broadcast %2 : i32 to vector<4x32xi32>
    %4 = arith.remsi %0, %3 : vector<4x32xi32>
    %c0_i32_0 = arith.constant 0 : i32
    %5 = vector.broadcast %c0_i32_0 : i32 to vector<4x32xi32>
    %6 = arith.cmpi ne, %4, %5 : vector<4x32xi32>
    %c0_i32_1 = arith.constant 0 : i32
    %7 = vector.broadcast %c0_i32_1 : i32 to vector<4x32xi32>
    %8 = arith.cmpi slt, %4, %7 : vector<4x32xi32>
    %c0_i32_2 = arith.constant 0 : i32
    %9 = arith.cmpi slt, %2, %c0_i32_2 : i32
    %10 = vector.broadcast %9 : i1 to vector<4x32xi1>
    %11 = vector.broadcast %10 : vector<4x32xi1> to vector<4x32xi1>
    %12 = arith.xori %8, %11 : vector<4x32xi1>
    %13 = arith.andi %12, %6 : vector<4x32xi1>
    %14 = vector.broadcast %2 : i32 to vector<4x32xi32>
    %15 = arith.addi %4, %14 : vector<4x32xi32>
    %16 = arith.select %13, %15, %4 : vector<4x32xi1>, vector<4x32xi32>
    %c0_i32_3 = arith.constant 0 : i32
    %17 = vector.broadcast %c0_i32_3 : i32 to vector<4x32xi32>
    %18 = arith.cmpi eq, %16, %17 : vector<4x32xi32>
    %c15_i32 = arith.constant 15 : i32
    %19 = vector.broadcast %c15_i32 : i32 to vector<4x32xi32>
    %20 = arith.cmpi eq, %16, %19 : vector<4x32xi32>
    %c0 = arith.constant 0 : index
    %c0_4 = arith.constant 0 : index
    %21 = vector.load %arg0[%c0, %c0_4] : memref<4x32xf32, #tpu.memory_space<vmem>>, vector<4x32xf32>
    %c0_5 = arith.constant 0 : index
    %c0_6 = arith.constant 0 : index
    %22 = vector.load %arg1[%c0_5, %c0_6] : memref<4x12xf32, #tpu.memory_space<vmem>>, vector<4x12xf32>
    %c1_i32_7 = arith.constant 1 : i32
    %23 = tpu.dynamic_rotate %21 by %c1_i32_7 dim 1 : vector<4x32xf32>, i32 -> vector<4x32xf32>
    %cst = arith.constant 0.000000e+00 : f32
    %24 = vector.broadcast %cst : f32 to vector<4x32xf32>
    %25 = arith.select %18, %24, %23 : vector<4x32xi1>, vector<4x32xf32>
    %c31_i32 = arith.constant 31 : i32
    %26 = tpu.dynamic_rotate %21 by %c31_i32 dim 1 : vector<4x32xf32>, i32 -> vector<4x32xf32>
    %cst_8 = arith.constant 0.000000e+00 : f32
    %27 = vector.broadcast %cst_8 : f32 to vector<4x32xf32>
    %28 = arith.select %20, %27, %26 : vector<4x32xi1>, vector<4x32xf32>
    %cst_9 = arith.constant 0.000000e+00 : f32
    %29 = vector.broadcast %cst_9 : f32 to vector<4x32xf32>
    %30 = vector.extract_strided_slice %22 {offsets = [0, 0], sizes = [4, 1], strides = [1, 1]} : vector<4x12xf32> to vector<4x1xf32>
    %31 = vector.extract_strided_slice %25 {offsets = [0, 0], sizes = [1, 32], strides = [1, 1]} : vector<4x32xf32> to vector<1x32xf32>
    %32 = vector.broadcast %30 : vector<4x1xf32> to vector<4x32xf32>
    %33 = vector.broadcast %31 : vector<1x32xf32> to vector<4x32xf32>
    %34 = arith.mulf %32, %33 : vector<4x32xf32>
    %35 = arith.addf %29, %34 : vector<4x32xf32>
    %36 = vector.extract_strided_slice %22 {offsets = [0, 1], sizes = [4, 1], strides = [1, 1]} : vector<4x12xf32> to vector<4x1xf32>
    %37 = vector.extract_strided_slice %21 {offsets = [0, 0], sizes = [1, 32], strides = [1, 1]} : vector<4x32xf32> to vector<1x32xf32>
    %38 = vector.broadcast %36 : vector<4x1xf32> to vector<4x32xf32>
    %39 = vector.broadcast %37 : vector<1x32xf32> to vector<4x32xf32>
    %40 = arith.mulf %38, %39 : vector<4x32xf32>
    %41 = arith.addf %35, %40 : vector<4x32xf32>
    %42 = vector.extract_strided_slice %22 {offsets = [0, 2], sizes = [4, 1], strides = [1, 1]} : vector<4x12xf32> to vector<4x1xf32>
    %43 = vector.extract_strided_slice %28 {offsets = [0, 0], sizes = [1, 32], strides = [1, 1]} : vector<4x32xf32> to vector<1x32xf32>
    %44 = vector.broadcast %42 : vector<4x1xf32> to vector<4x32xf32>
    %45 = vector.broadcast %43 : vector<1x32xf32> to vector<4x32xf32>
    %46 = arith.mulf %44, %45 : vector<4x32xf32>
    %47 = arith.addf %41, %46 : vector<4x32xf32>
    %48 = vector.extract_strided_slice %22 {offsets = [0, 3], sizes = [4, 1], strides = [1, 1]} : vector<4x12xf32> to vector<4x1xf32>
    %49 = vector.extract_strided_slice %25 {offsets = [1, 0], sizes = [1, 32], strides = [1, 1]} : vector<4x32xf32> to vector<1x32xf32>
    %50 = vector.broadcast %48 : vector<4x1xf32> to vector<4x32xf32>
    %51 = vector.broadcast %49 : vector<1x32xf32> to vector<4x32xf32>
    %52 = arith.mulf %50, %51 : vector<4x32xf32>
    %53 = arith.addf %47, %52 : vector<4x32xf32>
    %54 = vector.extract_strided_slice %22 {offsets = [0, 4], sizes = [4, 1], strides = [1, 1]} : vector<4x12xf32> to vector<4x1xf32>
    %55 = vector.extract_strided_slice %21 {offsets = [1, 0], sizes = [1, 32], strides = [1, 1]} : vector<4x32xf32> to vector<1x32xf32>
    %56 = vector.broadcast %54 : vector<4x1xf32> to vector<4x32xf32>
    %57 = vector.broadcast %55 : vector<1x32xf32> to vector<4x32xf32>
    %58 = arith.mulf %56, %57 : vector<4x32xf32>
    %59 = arith.addf %53, %58 : vector<4x32xf32>
    %60 = vector.extract_strided_slice %22 {offsets = [0, 5], sizes = [4, 1], strides = [1, 1]} : vector<4x12xf32> to vector<4x1xf32>
    %61 = vector.extract_strided_slice %28 {offsets = [1, 0], sizes = [1, 32], strides = [1, 1]} : vector<4x32xf32> to vector<1x32xf32>
    %62 = vector.broadcast %60 : vector<4x1xf32> to vector<4x32xf32>
    %63 = vector.broadcast %61 : vector<1x32xf32> to vector<4x32xf32>
    %64 = arith.mulf %62, %63 : vector<4x32xf32>
    %65 = arith.addf %59, %64 : vector<4x32xf32>
    %66 = vector.extract_strided_slice %22 {offsets = [0, 6], sizes = [4, 1], strides = [1, 1]} : vector<4x12xf32> to vector<4x1xf32>
    %67 = vector.extract_strided_slice %25 {offsets = [2, 0], sizes = [1, 32], strides = [1, 1]} : vector<4x32xf32> to vector<1x32xf32>
    %68 = vector.broadcast %66 : vector<4x1xf32> to vector<4x32xf32>
    %69 = vector.broadcast %67 : vector<1x32xf32> to vector<4x32xf32>
    %70 = arith.mulf %68, %69 : vector<4x32xf32>
    %71 = arith.addf %65, %70 : vector<4x32xf32>
    %72 = vector.extract_strided_slice %22 {offsets = [0, 7], sizes = [4, 1], strides = [1, 1]} : vector<4x12xf32> to vector<4x1xf32>
    %73 = vector.extract_strided_slice %21 {offsets = [2, 0], sizes = [1, 32], strides = [1, 1]} : vector<4x32xf32> to vector<1x32xf32>
    %74 = vector.broadcast %72 : vector<4x1xf32> to vector<4x32xf32>
    %75 = vector.broadcast %73 : vector<1x32xf32> to vector<4x32xf32>
    %76 = arith.mulf %74, %75 : vector<4x32xf32>
    %77 = arith.addf %71, %76 : vector<4x32xf32>
    %78 = vector.extract_strided_slice %22 {offsets = [0, 8], sizes = [4, 1], strides = [1, 1]} : vector<4x12xf32> to vector<4x1xf32>
    %79 = vector.extract_strided_slice %28 {offsets = [2, 0], sizes = [1, 32], strides = [1, 1]} : vector<4x32xf32> to vector<1x32xf32>
    %80 = vector.broadcast %78 : vector<4x1xf32> to vector<4x32xf32>
    %81 = vector.broadcast %79 : vector<1x32xf32> to vector<4x32xf32>
    %82 = arith.mulf %80, %81 : vector<4x32xf32>
    %83 = arith.addf %77, %82 : vector<4x32xf32>
    %84 = vector.extract_strided_slice %22 {offsets = [0, 9], sizes = [4, 1], strides = [1, 1]} : vector<4x12xf32> to vector<4x1xf32>
    %85 = vector.extract_strided_slice %25 {offsets = [3, 0], sizes = [1, 32], strides = [1, 1]} : vector<4x32xf32> to vector<1x32xf32>
    %86 = vector.broadcast %84 : vector<4x1xf32> to vector<4x32xf32>
    %87 = vector.broadcast %85 : vector<1x32xf32> to vector<4x32xf32>
    %88 = arith.mulf %86, %87 : vector<4x32xf32>
    %89 = arith.addf %83, %88 : vector<4x32xf32>
    %90 = vector.extract_strided_slice %22 {offsets = [0, 10], sizes = [4, 1], strides = [1, 1]} : vector<4x12xf32> to vector<4x1xf32>
    %91 = vector.extract_strided_slice %21 {offsets = [3, 0], sizes = [1, 32], strides = [1, 1]} : vector<4x32xf32> to vector<1x32xf32>
    %92 = vector.broadcast %90 : vector<4x1xf32> to vector<4x32xf32>
    %93 = vector.broadcast %91 : vector<1x32xf32> to vector<4x32xf32>
    %94 = arith.mulf %92, %93 : vector<4x32xf32>
    %95 = arith.addf %89, %94 : vector<4x32xf32>
    %96 = vector.extract_strided_slice %22 {offsets = [0, 11], sizes = [4, 1], strides = [1, 1]} : vector<4x12xf32> to vector<4x1xf32>
    %97 = vector.extract_strided_slice %28 {offsets = [3, 0], sizes = [1, 32], strides = [1, 1]} : vector<4x32xf32> to vector<1x32xf32>
    %98 = vector.broadcast %96 : vector<4x1xf32> to vector<4x32xf32>
    %99 = vector.broadcast %97 : vector<1x32xf32> to vector<4x32xf32>
    %100 = arith.mulf %98, %99 : vector<4x32xf32>
    %101 = arith.addf %95, %100 : vector<4x32xf32>
    %cst_10 = arith.constant dense<0.000000e+00> : vector<4xf32>
    %102 = vector.multi_reduction <add>, %101, %cst_10 [1] : vector<4x32xf32> to vector<4xf32>
    %103 = vector.shape_cast %102 : vector<4xf32> to vector<4x1xf32>
    %cst_11 = arith.constant 3.125000e-02 : f32
    %104 = vector.broadcast %cst_11 : f32 to vector<4x1xf32>
    %105 = arith.mulf %103, %104 : vector<4x1xf32>
    %106 = vector.broadcast %105 : vector<4x1xf32> to vector<4x32xf32>
    %107 = arith.subf %101, %106 : vector<4x32xf32>
    %108 = arith.mulf %107, %107 : vector<4x32xf32>
    %cst_12 = arith.constant dense<0.000000e+00> : vector<4xf32>
    %109 = vector.multi_reduction <add>, %108, %cst_12 [1] : vector<4x32xf32> to vector<4xf32>
    %110 = vector.shape_cast %109 : vector<4xf32> to vector<4x1xf32>
    %cst_13 = arith.constant 3.125000e-02 : f32
    %111 = vector.broadcast %cst_13 : f32 to vector<4x1xf32>
    %112 = arith.mulf %110, %111 : vector<4x1xf32>
    %cst_14 = arith.constant 9.99999974E-6 : f32
    %113 = vector.broadcast %cst_14 : f32 to vector<4x1xf32>
    %114 = arith.addf %112, %113 : vector<4x1xf32>
    %115 = math.rsqrt %114 : vector<4x1xf32>
    %116 = vector.broadcast %115 : vector<4x1xf32> to vector<4x32xf32>
    %117 = arith.mulf %107, %116 : vector<4x32xf32>
    %c0_15 = arith.constant 0 : index
    %c0_16 = arith.constant 0 : index
    %118 = vector.load %arg2[%c0_15, %c0_16] : memref<4x1xf32, #tpu.memory_space<vmem>>, vector<4x1xf32>
    %119 = vector.broadcast %118 : vector<4x1xf32> to vector<4x32xf32>
    %120 = arith.mulf %117, %119 : vector<4x32xf32>
    %c0_17 = arith.constant 0 : index
    %c0_18 = arith.constant 0 : index
    %121 = vector.load %arg3[%c0_17, %c0_18] : memref<4x1xf32, #tpu.memory_space<vmem>>, vector<4x1xf32>
    %122 = vector.broadcast %121 : vector<4x1xf32> to vector<4x32xf32>
    %123 = arith.addf %120, %122 : vector<4x32xf32>
    %cst_19 = arith.constant 0.000000e+00 : f32
    %124 = vector.broadcast %cst_19 : f32 to vector<4x32xf32>
    %125 = arith.maximumf %123, %124 : vector<4x32xf32>
    %c0_20 = arith.constant 0 : index
    %c0_21 = arith.constant 0 : index
    %126 = vector.load %arg4[%c0_20, %c0_21] : memref<4x12xf32, #tpu.memory_space<vmem>>, vector<4x12xf32>
    %c1_i32_22 = arith.constant 1 : i32
    %127 = tpu.dynamic_rotate %125 by %c1_i32_22 dim 1 : vector<4x32xf32>, i32 -> vector<4x32xf32>
    %cst_23 = arith.constant 0.000000e+00 : f32
    %128 = vector.broadcast %cst_23 : f32 to vector<4x32xf32>
    %129 = arith.select %18, %128, %127 : vector<4x32xi1>, vector<4x32xf32>
    %c31_i32_24 = arith.constant 31 : i32
    %130 = tpu.dynamic_rotate %125 by %c31_i32_24 dim 1 : vector<4x32xf32>, i32 -> vector<4x32xf32>
    %cst_25 = arith.constant 0.000000e+00 : f32
    %131 = vector.broadcast %cst_25 : f32 to vector<4x32xf32>
    %132 = arith.select %20, %131, %130 : vector<4x32xi1>, vector<4x32xf32>
    %cst_26 = arith.constant 0.000000e+00 : f32
    %133 = vector.broadcast %cst_26 : f32 to vector<4x32xf32>
    %134 = vector.extract_strided_slice %126 {offsets = [0, 0], sizes = [4, 1], strides = [1, 1]} : vector<4x12xf32> to vector<4x1xf32>
    %135 = vector.extract_strided_slice %129 {offsets = [0, 0], sizes = [1, 32], strides = [1, 1]} : vector<4x32xf32> to vector<1x32xf32>
    %136 = vector.broadcast %134 : vector<4x1xf32> to vector<4x32xf32>
    %137 = vector.broadcast %135 : vector<1x32xf32> to vector<4x32xf32>
    %138 = arith.mulf %136, %137 : vector<4x32xf32>
    %139 = arith.addf %133, %138 : vector<4x32xf32>
    %140 = vector.extract_strided_slice %126 {offsets = [0, 1], sizes = [4, 1], strides = [1, 1]} : vector<4x12xf32> to vector<4x1xf32>
    %141 = vector.extract_strided_slice %125 {offsets = [0, 0], sizes = [1, 32], strides = [1, 1]} : vector<4x32xf32> to vector<1x32xf32>
    %142 = vector.broadcast %140 : vector<4x1xf32> to vector<4x32xf32>
    %143 = vector.broadcast %141 : vector<1x32xf32> to vector<4x32xf32>
    %144 = arith.mulf %142, %143 : vector<4x32xf32>
    %145 = arith.addf %139, %144 : vector<4x32xf32>
    %146 = vector.extract_strided_slice %126 {offsets = [0, 2], sizes = [4, 1], strides = [1, 1]} : vector<4x12xf32> to vector<4x1xf32>
    %147 = vector.extract_strided_slice %132 {offsets = [0, 0], sizes = [1, 32], strides = [1, 1]} : vector<4x32xf32> to vector<1x32xf32>
    %148 = vector.broadcast %146 : vector<4x1xf32> to vector<4x32xf32>
    %149 = vector.broadcast %147 : vector<1x32xf32> to vector<4x32xf32>
    %150 = arith.mulf %148, %149 : vector<4x32xf32>
    %151 = arith.addf %145, %150 : vector<4x32xf32>
    %152 = vector.extract_strided_slice %126 {offsets = [0, 3], sizes = [4, 1], strides = [1, 1]} : vector<4x12xf32> to vector<4x1xf32>
    %153 = vector.extract_strided_slice %129 {offsets = [1, 0], sizes = [1, 32], strides = [1, 1]} : vector<4x32xf32> to vector<1x32xf32>
    %154 = vector.broadcast %152 : vector<4x1xf32> to vector<4x32xf32>
    %155 = vector.broadcast %153 : vector<1x32xf32> to vector<4x32xf32>
    %156 = arith.mulf %154, %155 : vector<4x32xf32>
    %157 = arith.addf %151, %156 : vector<4x32xf32>
    %158 = vector.extract_strided_slice %126 {offsets = [0, 4], sizes = [4, 1], strides = [1, 1]} : vector<4x12xf32> to vector<4x1xf32>
    %159 = vector.extract_strided_slice %125 {offsets = [1, 0], sizes = [1, 32], strides = [1, 1]} : vector<4x32xf32> to vector<1x32xf32>
    %160 = vector.broadcast %158 : vector<4x1xf32> to vector<4x32xf32>
    %161 = vector.broadcast %159 : vector<1x32xf32> to vector<4x32xf32>
    %162 = arith.mulf %160, %161 : vector<4x32xf32>
    %163 = arith.addf %157, %162 : vector<4x32xf32>
    %164 = vector.extract_strided_slice %126 {offsets = [0, 5], sizes = [4, 1], strides = [1, 1]} : vector<4x12xf32> to vector<4x1xf32>
    %165 = vector.extract_strided_slice %132 {offsets = [1, 0], sizes = [1, 32], strides = [1, 1]} : vector<4x32xf32> to vector<1x32xf32>
    %166 = vector.broadcast %164 : vector<4x1xf32> to vector<4x32xf32>
    %167 = vector.broadcast %165 : vector<1x32xf32> to vector<4x32xf32>
    %168 = arith.mulf %166, %167 : vector<4x32xf32>
    %169 = arith.addf %163, %168 : vector<4x32xf32>
    %170 = vector.extract_strided_slice %126 {offsets = [0, 6], sizes = [4, 1], strides = [1, 1]} : vector<4x12xf32> to vector<4x1xf32>
    %171 = vector.extract_strided_slice %129 {offsets = [2, 0], sizes = [1, 32], strides = [1, 1]} : vector<4x32xf32> to vector<1x32xf32>
    %172 = vector.broadcast %170 : vector<4x1xf32> to vector<4x32xf32>
    %173 = vector.broadcast %171 : vector<1x32xf32> to vector<4x32xf32>
    %174 = arith.mulf %172, %173 : vector<4x32xf32>
    %175 = arith.addf %169, %174 : vector<4x32xf32>
    %176 = vector.extract_strided_slice %126 {offsets = [0, 7], sizes = [4, 1], strides = [1, 1]} : vector<4x12xf32> to vector<4x1xf32>
    %177 = vector.extract_strided_slice %125 {offsets = [2, 0], sizes = [1, 32], strides = [1, 1]} : vector<4x32xf32> to vector<1x32xf32>
    %178 = vector.broadcast %176 : vector<4x1xf32> to vector<4x32xf32>
    %179 = vector.broadcast %177 : vector<1x32xf32> to vector<4x32xf32>
    %180 = arith.mulf %178, %179 : vector<4x32xf32>
    %181 = arith.addf %175, %180 : vector<4x32xf32>
    %182 = vector.extract_strided_slice %126 {offsets = [0, 8], sizes = [4, 1], strides = [1, 1]} : vector<4x12xf32> to vector<4x1xf32>
    %183 = vector.extract_strided_slice %132 {offsets = [2, 0], sizes = [1, 32], strides = [1, 1]} : vector<4x32xf32> to vector<1x32xf32>
    %184 = vector.broadcast %182 : vector<4x1xf32> to vector<4x32xf32>
    %185 = vector.broadcast %183 : vector<1x32xf32> to vector<4x32xf32>
    %186 = arith.mulf %184, %185 : vector<4x32xf32>
    %187 = arith.addf %181, %186 : vector<4x32xf32>
    %188 = vector.extract_strided_slice %126 {offsets = [0, 9], sizes = [4, 1], strides = [1, 1]} : vector<4x12xf32> to vector<4x1xf32>
    %189 = vector.extract_strided_slice %129 {offsets = [3, 0], sizes = [1, 32], strides = [1, 1]} : vector<4x32xf32> to vector<1x32xf32>
    %190 = vector.broadcast %188 : vector<4x1xf32> to vector<4x32xf32>
    %191 = vector.broadcast %189 : vector<1x32xf32> to vector<4x32xf32>
    %192 = arith.mulf %190, %191 : vector<4x32xf32>
    %193 = arith.addf %187, %192 : vector<4x32xf32>
    %194 = vector.extract_strided_slice %126 {offsets = [0, 10], sizes = [4, 1], strides = [1, 1]} : vector<4x12xf32> to vector<4x1xf32>
    %195 = vector.extract_strided_slice %125 {offsets = [3, 0], sizes = [1, 32], strides = [1, 1]} : vector<4x32xf32> to vector<1x32xf32>
    %196 = vector.broadcast %194 : vector<4x1xf32> to vector<4x32xf32>
    %197 = vector.broadcast %195 : vector<1x32xf32> to vector<4x32xf32>
    %198 = arith.mulf %196, %197 : vector<4x32xf32>
    %199 = arith.addf %193, %198 : vector<4x32xf32>
    %200 = vector.extract_strided_slice %126 {offsets = [0, 11], sizes = [4, 1], strides = [1, 1]} : vector<4x12xf32> to vector<4x1xf32>
    %201 = vector.extract_strided_slice %132 {offsets = [3, 0], sizes = [1, 32], strides = [1, 1]} : vector<4x32xf32> to vector<1x32xf32>
    %202 = vector.broadcast %200 : vector<4x1xf32> to vector<4x32xf32>
    %203 = vector.broadcast %201 : vector<1x32xf32> to vector<4x32xf32>
    %204 = arith.mulf %202, %203 : vector<4x32xf32>
    %205 = arith.addf %199, %204 : vector<4x32xf32>
    %cst_27 = arith.constant dense<0.000000e+00> : vector<4xf32>
    %206 = vector.multi_reduction <add>, %205, %cst_27 [1] : vector<4x32xf32> to vector<4xf32>
    %207 = vector.shape_cast %206 : vector<4xf32> to vector<4x1xf32>
    %cst_28 = arith.constant 3.125000e-02 : f32
    %208 = vector.broadcast %cst_28 : f32 to vector<4x1xf32>
    %209 = arith.mulf %207, %208 : vector<4x1xf32>
    %210 = vector.broadcast %209 : vector<4x1xf32> to vector<4x32xf32>
    %211 = arith.subf %205, %210 : vector<4x32xf32>
    %212 = arith.mulf %211, %211 : vector<4x32xf32>
    %cst_29 = arith.constant dense<0.000000e+00> : vector<4xf32>
    %213 = vector.multi_reduction <add>, %212, %cst_29 [1] : vector<4x32xf32> to vector<4xf32>
    %214 = vector.shape_cast %213 : vector<4xf32> to vector<4x1xf32>
    %cst_30 = arith.constant 3.125000e-02 : f32
    %215 = vector.broadcast %cst_30 : f32 to vector<4x1xf32>
    %216 = arith.mulf %214, %215 : vector<4x1xf32>
    %cst_31 = arith.constant 9.99999974E-6 : f32
    %217 = vector.broadcast %cst_31 : f32 to vector<4x1xf32>
    %218 = arith.addf %216, %217 : vector<4x1xf32>
    %219 = math.rsqrt %218 : vector<4x1xf32>
    %220 = vector.broadcast %219 : vector<4x1xf32> to vector<4x32xf32>
    %221 = arith.mulf %211, %220 : vector<4x32xf32>
    %c0_32 = arith.constant 0 : index
    %c0_33 = arith.constant 0 : index
    %222 = vector.load %arg5[%c0_32, %c0_33] : memref<4x1xf32, #tpu.memory_space<vmem>>, vector<4x1xf32>
    %223 = vector.broadcast %222 : vector<4x1xf32> to vector<4x32xf32>
    %224 = arith.mulf %221, %223 : vector<4x32xf32>
    %c0_34 = arith.constant 0 : index
    %c0_35 = arith.constant 0 : index
    %225 = vector.load %arg6[%c0_34, %c0_35] : memref<4x1xf32, #tpu.memory_space<vmem>>, vector<4x1xf32>
    %226 = vector.broadcast %225 : vector<4x1xf32> to vector<4x32xf32>
    %227 = arith.addf %224, %226 : vector<4x32xf32>
    %228 = arith.addf %227, %21 : vector<4x32xf32>
    %cst_36 = arith.constant 0.000000e+00 : f32
    %229 = vector.broadcast %cst_36 : f32 to vector<4x32xf32>
    %230 = arith.maximumf %228, %229 : vector<4x32xf32>
    %c0_37 = arith.constant 0 : index
    %c0_38 = arith.constant 0 : index
    %231 = vector.load %arg7[%c0_37, %c0_38] : memref<4x32xf32, #tpu.memory_space<vmem>>, vector<4x32xf32>
    tpu.vector_store %arg7[%c0_37, %c0_38], %230 {strides = array<i32>} : memref<4x32xf32, #tpu.memory_space<vmem>>, vector<4x32xf32>,
    return
  }
}

</mosaic_0001>

<llo_original>
// kernel: tpu_custom_call.1
$region0: #{tpu_custom_call.1}
  #allocation0 [shape = 'u32[]', space=smem, size = 0x4, offset = 0x4, fixed_abs, tag = 'smem constant byte address 0x4 - core index']
  #allocation1 [shape = 'u32[144,128]{1,0:T(1,128)}', space=vmem, size = 0x12000, scoped, tag = 'internal scratch']
  %s0 = inlined_call_operand.vmem [shape: f32[4,32], index: 0, kind: input, shape index: {}]
  %s1 = inlined_call_operand.vmem [shape: f32[4,12], index: 1, kind: input, shape index: {}]
  %s2 = inlined_call_operand.vmem [shape: f32[4,1], index: 2, kind: input, shape index: {}]
  %s3 = inlined_call_operand.vmem [shape: f32[4,1], index: 3, kind: input, shape index: {}]
  %s4 = inlined_call_operand.vmem [shape: f32[4,12], index: 4, kind: input, shape index: {}]
  %s5 = inlined_call_operand.vmem [shape: f32[4,1], index: 5, kind: input, shape index: {}]
  %s6 = inlined_call_operand.vmem [shape: f32[4,1], index: 6, kind: input, shape index: {}]
  %s7 = inlined_call_operand.hbm [shape: f32[4,32], index: 7, kind: output, shape index: {}]
  %s8 = sld [smem:[#allocation0]]
  $region38: #{tpu_custom_call.1} parent=0
    _
  %s10 = ssub.s32 1, %s8
  %s11 = scalar_select 0, %s10, %s8
  $region1: #{tpu_custom_call.1} parent=0
    #allocation2 [shape = 'u8[2048]{0}', space=vmem, size = 0x800, scoped, tag = 'output window, operand 0, single buffered']
    #allocation3 [shape = 's32[1]{0}', space=sflag, size = 0x4, scoped, tag = 'scoped memory for tpu_custom_call.1']
    %12 = vsyncpa [#allocation3], 0
    // Predicated region
    $region2: #{tpu_custom_call.1} parent=1 // pred_check
      _
    $region3: #{tpu_custom_call.1} parent=1 // pred_check_branch
      %14 = sbr.rel (0) target = $region5
    $region4: #{tpu_custom_call.1} parent=1 // pred_region
      _
    $region5: #{tpu_custom_call.1} parent=1 // pred_fallthru
      _
    // Predicated region
    $region6: #{tpu_custom_call.1} parent=1 // pred_check
      _
    $region7: #{tpu_custom_call.1} parent=1 // pred_check_branch
      %16 = sbr.rel (0) target = $region9
    $region8: #{tpu_custom_call.1} parent=1 // pred_region
      _
    $region9: #{tpu_custom_call.1} parent=1 // pred_fallthru
      _
    // Predicated region
    $region10: #{tpu_custom_call.1} parent=1 // pred_check
      _
    $region11: #{tpu_custom_call.1} parent=1 // pred_check_branch
      %18 = sbr.rel (0) target = $region13
    $region12: #{tpu_custom_call.1} parent=1 // pred_region
      _
    $region13: #{tpu_custom_call.1} parent=1 // pred_fallthru
      _
    // Predicated region
    $region14: #{tpu_custom_call.1} parent=1 // pred_check
      _
    $region15: #{tpu_custom_call.1} parent=1 // pred_check_branch
      %20 = sbr.rel (0) target = $region17
    $region16: #{tpu_custom_call.1} parent=1 // pred_region
      _
    $region17: #{tpu_custom_call.1} parent=1 // pred_fallthru
      _
    // Predicated region
    $region18: #{tpu_custom_call.1} parent=1 // pred_check
      _
    $region19: #{tpu_custom_call.1} parent=1 // pred_check_branch
      %22 = sbr.rel (0) target = $region21
    $region20: #{tpu_custom_call.1} parent=1 // pred_region
      _
    $region21: #{tpu_custom_call.1} parent=1 // pred_fallthru
      _
    // Predicated region
    $region22: #{tpu_custom_call.1} parent=1 // pred_check
      _
    $region23: #{tpu_custom_call.1} parent=1 // pred_check_branch
      %24 = sbr.rel (0) target = $region25
    $region24: #{tpu_custom_call.1} parent=1 // pred_region
      _
    $region25: #{tpu_custom_call.1} parent=1 // pred_fallthru
      _
    // Predicated region
    $region26: #{tpu_custom_call.1} parent=1 // pred_check
      _
    $region27: #{tpu_custom_call.1} parent=1 // pred_check_branch
      %26 = sbr.rel (0) target = $region29
    $region28: #{tpu_custom_call.1} parent=1 // pred_region
      _
    $region29: #{tpu_custom_call.1} parent=1 // pred_fallthru
      _
    %v27 = vlaneseq
    %v28 = vand.u32 %v27, 127
    %vm29 = vcmp.lt.s32.totalorder %v28, 0
    %v30 = vsub.s32 0, %v28
    %v31 = vsel %vm29, %v30, %v28
    %v32 = vshrl.u32 %v31, 4
    %v33 = vand.u32 %v31, 15
    %v34 = vsub.s32 0, %v33
    %v35 = vsel %vm29, %v34, %v33
    %vm36 = vcmp.ne.s32.totalorder %v35, 0
    %vm37 = vcmp.lt.s32.totalorder %v35, 0
    %vm38 = vmand %vm37, %vm36
    %v39 = vadd.s32 %v35, 16
    %v40 = vsel %vm38, %v39, %v35
    %vm41 = vcmp.eq.s32.totalorder %v40, 0
    %vm42 = vcmp.eq.s32.totalorder %v40, 15
    %v43 = vld [vmem:[%s0] sm:$0xf]
    %v44 = vld [vmem:[%s1] sm:$0xf]
    %vm45 = vcmask 1047808
    %46 = vrot.lane.b32.xlu0 %v43, 32
    %v47 = vpop.permute.xlu0 %46
    %v48 = vsel %vm45, %v47, %v43
    %49 = vrot.lane.b32.xlu0 %v48, 32
    %v50 = vpop.permute.xlu0 %49
    %v51 = vsel %vm45, %v50, %v43
    %53 = vrot.lane.b32.xlu0 %v51, 97
    %v54 = vpop.permute.xlu0 %53
    %v56 = vsel %vm41, 0.0, %v54
    %57 = vrot.lane.b32.xlu0 %v51, 127
    %v58 = vpop.permute.xlu0 %57
    %v60 = vsel %vm42, 0.0, %v58
    %62 = vset.pattern.permute.xlu0 0
    %63 = vperm.xlu0 %62, %v44
    %v64 = vpop.permute.xlu0 %63
    %v66 = vlaneseq
    %v67 = vshrl.u32 %v66, 7
    %v68 = vsub.s32 0, %v67
    %v69 = vrot.slane %v56, %v68
    %v70 = vmul.f32 %v64, %v69
    %v71 = vadd.f32 %v70, 0.0
    %72 = vset.pattern.permute.xlu0 1
    %73 = vperm.xlu0 %72, %v44
    %v74 = vpop.permute.xlu0 %73
    %v76 = vlaneseq
    %v77 = vshrl.u32 %v76, 7
    %v78 = vsub.s32 0, %v77
    %v79 = vrot.slane %v43, %v78
    %v80 = vmul.f32 %v74, %v79
    %v81 = vadd.f32 %v71, %v80
    %82 = vset.pattern.permute.xlu0 2
    %83 = vperm.xlu0 %82, %v44
    %v84 = vpop.permute.xlu0 %83
    %v86 = vlaneseq
    %v87 = vshrl.u32 %v86, 7
    %v88 = vsub.s32 0, %v87
    %v89 = vrot.slane %v60, %v88
    %v90 = vmul.f32 %v84, %v89
    %v91 = vadd.f32 %v81, %v90
    %92 = vset.pattern.permute.xlu0 3
    %93 = vperm.xlu0 %92, %v44
    %v94 = vpop.permute.xlu0 %93
    %v96 = vlaneseq
    %v97 = vshrl.u32 %v96, 7
    %v98 = vsub.s32 1, %v97
    %v99 = vrot.slane %v56, %v98
    %v100 = vmul.f32 %v94, %v99
    %v101 = vadd.f32 %v91, %v100
    %102 = vset.pattern.permute.xlu0 4
    %103 = vperm.xlu0 %102, %v44
    %v104 = vpop.permute.xlu0 %103
    %v106 = vlaneseq
    %v107 = vshrl.u32 %v106, 7
    %v108 = vsub.s32 1, %v107
    %v109 = vrot.slane %v43, %v108
    %v110 = vmul.f32 %v104, %v109
    %v111 = vadd.f32 %v101, %v110
    %112 = vset.pattern.permute.xlu0 5
    %113 = vperm.xlu0 %112, %v44
    %v114 = vpop.permute.xlu0 %113
    %v116 = vlaneseq
    %v117 = vshrl.u32 %v116, 7
    %v118 = vsub.s32 1, %v117
    %v119 = vrot.slane %v60, %v118
    %v120 = vmul.f32 %v114, %v119
    %v121 = vadd.f32 %v111, %v120
    %122 = vset.pattern.permute.xlu0 6
    %123 = vperm.xlu0 %122, %v44
    %v124 = vpop.permute.xlu0 %123
    %v126 = vlaneseq
    %v127 = vshrl.u32 %v126, 7
    %v128 = vsub.s32 2, %v127
    %v129 = vrot.slane %v56, %v128
    %v130 = vmul.f32 %v124, %v129
    %v131 = vadd.f32 %v121, %v130
    %132 = vset.pattern.permute.xlu0 7
    %133 = vperm.xlu0 %132, %v44
    %v134 = vpop.permute.xlu0 %133
    %v136 = vlaneseq
    %v137 = vshrl.u32 %v136, 7
    %v138 = vsub.s32 2, %v137
    %v139 = vrot.slane %v43, %v138
    %v140 = vmul.f32 %v134, %v139
    %v141 = vadd.f32 %v131, %v140
    %142 = vset.pattern.permute.xlu0 8
    %143 = vperm.xlu0 %142, %v44
    %v144 = vpop.permute.xlu0 %143
    %v146 = vlaneseq
    %v147 = vshrl.u32 %v146, 7
    %v148 = vsub.s32 2, %v147
    %v149 = vrot.slane %v60, %v148
    %v150 = vmul.f32 %v144, %v149
    %v151 = vadd.f32 %v141, %v150
    %152 = vset.pattern.permute.xlu0 9
    %153 = vperm.xlu0 %152, %v44
    %v154 = vpop.permute.xlu0 %153
    %v156 = vlaneseq
    %v157 = vshrl.u32 %v156, 7
    %v158 = vsub.s32 3, %v157
    %v159 = vrot.slane %v56, %v158
    %v160 = vmul.f32 %v154, %v159
    %v161 = vadd.f32 %v151, %v160
    %162 = vset.pattern.permute.xlu0 10
    %163 = vperm.xlu0 %162, %v44
    %v164 = vpop.permute.xlu0 %163
    %v166 = vlaneseq
    %v167 = vshrl.u32 %v166, 7
    %v168 = vsub.s32 3, %v167
    %v169 = vrot.slane %v43, %v168
    %v170 = vmul.f32 %v164, %v169
    %v171 = vadd.f32 %v161, %v170
    %172 = vset.pattern.permute.xlu0 11
    %173 = vperm.xlu0 %172, %v44
    %v174 = vpop.permute.xlu0 %173
    %v176 = vlaneseq
    %v177 = vshrl.u32 %v176, 7
    %v178 = vsub.s32 3, %v177
    %v179 = vrot.slane %v60, %v178
    %v180 = vmul.f32 %v174, %v179
    %v181 = vadd.f32 %v171, %v180
    %vm182 = vcmask 257024
    %v183 = vsel %vm182, %v181, 0.0
    %184 = vadd.xlane.f32.xlu0 %v183
    %v185 = vpop.xlane.xlu0 %184
    %v186 = vmul.f32 %v185, 0.03125
    %v187 = vsub.f32 %v181, %v186
    %v188 = vmul.f32 %v187, %v187
    %v189 = vsel %vm182, %v188, 0.0
    %190 = vadd.xlane.f32.xlu0 %v189
    %v191 = vpop.xlane.xlu0 %190
    %v192 = vmul.f32 %v191, 0.03125
    %v193 = vadd.f32 %v192, 1e-05
    %v194 = vrsqrt.pop %v193
    %v195 = vmul.f32 %v187, %v194
    %v196 = vld [vmem:[%s2] sm:$0xf]
    %198 = vset.pattern.permute.xlu0 0
    %199 = vperm.xlu0 %198, %v196
    %v200 = vpop.permute.xlu0 %199
    %v202 = vmul.f32 %v195, %v200
    %v203 = vld [vmem:[%s3] sm:$0xf]
    %205 = vset.pattern.permute.xlu0 0
    %206 = vperm.xlu0 %205, %v203
    %v207 = vpop.permute.xlu0 %206
    %v209 = vadd.f32 %v202, %v207
    %v210 = vmax.f32 %v209, 0.0
    %v211 = vld [vmem:[%s4] sm:$0xf]
    %212 = vrot.lane.b32.xlu0 %v210, 32
    %v213 = vpop.permute.xlu0 %212
    %v214 = vsel %vm45, %v213, %v210
    %215 = vrot.lane.b32.xlu0 %v214, 32
    %v216 = vpop.permute.xlu0 %215
    %v217 = vsel %vm45, %v216, %v210
    %219 = vrot.lane.b32.xlu0 %v217, 97
    %v220 = vpop.permute.xlu0 %219
    %v222 = vsel %vm41, 0.0, %v220
    %223 = vrot.lane.b32.xlu0 %v217, 127
    %v224 = vpop.permute.xlu0 %223
    %v226 = vsel %vm42, 0.0, %v224
    %228 = vset.pattern.permute.xlu0 0
    %229 = vperm.xlu0 %228, %v211
    %v230 = vpop.permute.xlu0 %229
    %v232 = vlaneseq
    %v233 = vshrl.u32 %v232, 7
    %v234 = vsub.s32 0, %v233
    %v235 = vrot.slane %v222, %v234
    %v236 = vmul.f32 %v230, %v235
    %v237 = vadd.f32 %v236, 0.0
    %238 = vset.pattern.permute.xlu0 1
    %239 = vperm.xlu0 %238, %v211
    %v240 = vpop.permute.xlu0 %239
    %v242 = vlaneseq
    %v243 = vshrl.u32 %v242, 7
    %v244 = vsub.s32 0, %v243
    %v245 = vrot.slane %v210, %v244
    %v246 = vmul.f32 %v240, %v245
    %v247 = vadd.f32 %v237, %v246
    %248 = vset.pattern.permute.xlu0 2
    %249 = vperm.xlu0 %248, %v211
    %v250 = vpop.permute.xlu0 %249
    %v252 = vlaneseq
    %v253 = vshrl.u32 %v252, 7
    %v254 = vsub.s32 0, %v253
    %v255 = vrot.slane %v226, %v254
    %v256 = vmul.f32 %v250, %v255
    %v257 = vadd.f32 %v247, %v256
    %258 = vset.pattern.permute.xlu0 3
    %259 = vperm.xlu0 %258, %v211
    %v260 = vpop.permute.xlu0 %259
    %v262 = vlaneseq
    %v263 = vshrl.u32 %v262, 7
    %v264 = vsub.s32 1, %v263
    %v265 = vrot.slane %v222, %v264
    %v266 = vmul.f32 %v260, %v265
    %v267 = vadd.f32 %v257, %v266
    %268 = vset.pattern.permute.xlu0 4
    %269 = vperm.xlu0 %268, %v211
    %v270 = vpop.permute.xlu0 %269
    %v272 = vlaneseq
    %v273 = vshrl.u32 %v272, 7
    %v274 = vsub.s32 1, %v273
    %v275 = vrot.slane %v210, %v274
    %v276 = vmul.f32 %v270, %v275
    %v277 = vadd.f32 %v267, %v276
    %278 = vset.pattern.permute.xlu0 5
    %279 = vperm.xlu0 %278, %v211
    %v280 = vpop.permute.xlu0 %279
    %v282 = vlaneseq
    %v283 = vshrl.u32 %v282, 7
    %v284 = vsub.s32 1, %v283
    %v285 = vrot.slane %v226, %v284
    %v286 = vmul.f32 %v280, %v285
    %v287 = vadd.f32 %v277, %v286
    %288 = vset.pattern.permute.xlu0 6
    %289 = vperm.xlu0 %288, %v211
    %v290 = vpop.permute.xlu0 %289
    %v292 = vlaneseq
    %v293 = vshrl.u32 %v292, 7
    %v294 = vsub.s32 2, %v293
    %v295 = vrot.slane %v222, %v294
    %v296 = vmul.f32 %v290, %v295
    %v297 = vadd.f32 %v287, %v296
    %298 = vset.pattern.permute.xlu0 7
    %299 = vperm.xlu0 %298, %v211
    %v300 = vpop.permute.xlu0 %299
    %v302 = vlaneseq
    %v303 = vshrl.u32 %v302, 7
    %v304 = vsub.s32 2, %v303
    %v305 = vrot.slane %v210, %v304
    %v306 = vmul.f32 %v300, %v305
    %v307 = vadd.f32 %v297, %v306
    %308 = vset.pattern.permute.xlu0 8
    %309 = vperm.xlu0 %308, %v211
    %v310 = vpop.permute.xlu0 %309
    %v312 = vlaneseq
    %v313 = vshrl.u32 %v312, 7
    %v314 = vsub.s32 2, %v313
    %v315 = vrot.slane %v226, %v314
    %v316 = vmul.f32 %v310, %v315
    %v317 = vadd.f32 %v307, %v316
    %318 = vset.pattern.permute.xlu0 9
    %319 = vperm.xlu0 %318, %v211
    %v320 = vpop.permute.xlu0 %319
    %v322 = vlaneseq
    %v323 = vshrl.u32 %v322, 7
    %v324 = vsub.s32 3, %v323
    %v325 = vrot.slane %v222, %v324
    %v326 = vmul.f32 %v320, %v325
    %v327 = vadd.f32 %v317, %v326
    %328 = vset.pattern.permute.xlu0 10
    %329 = vperm.xlu0 %328, %v211
    %v330 = vpop.permute.xlu0 %329
    %v332 = vlaneseq
    %v333 = vshrl.u32 %v332, 7
    %v334 = vsub.s32 3, %v333
    %v335 = vrot.slane %v210, %v334
    %v336 = vmul.f32 %v330, %v335
    %v337 = vadd.f32 %v327, %v336
    %338 = vset.pattern.permute.xlu0 11
    %339 = vperm.xlu0 %338, %v211
    %v340 = vpop.permute.xlu0 %339
    %v342 = vlaneseq
    %v343 = vshrl.u32 %v342, 7
    %v344 = vsub.s32 3, %v343
    %v345 = vrot.slane %v226, %v344
    %v346 = vmul.f32 %v340, %v345
    %v347 = vadd.f32 %v337, %v346
    %v348 = vsel %vm182, %v347, 0.0
    %349 = vadd.xlane.f32.xlu0 %v348
    %v350 = vpop.xlane.xlu0 %349
    %v351 = vmul.f32 %v350, 0.03125
    %v352 = vsub.f32 %v347, %v351
    %v353 = vmul.f32 %v352, %v352
    %v354 = vsel %vm182, %v353, 0.0
    %355 = vadd.xlane.f32.xlu0 %v354
    %v356 = vpop.xlane.xlu0 %355
    %v357 = vmul.f32 %v356, 0.03125
    %v358 = vadd.f32 %v357, 1e-05
    %v359 = vrsqrt.pop %v358
    %v360 = vmul.f32 %v352, %v359
    %v361 = vld [vmem:[%s5] sm:$0xf]
    %363 = vset.pattern.permute.xlu0 0
    %364 = vperm.xlu0 %363, %v361
    %v365 = vpop.permute.xlu0 %364
    %v367 = vmul.f32 %v360, %v365
    %v368 = vld [vmem:[%s6] sm:$0xf]
    %370 = vset.pattern.permute.xlu0 0
    %371 = vperm.xlu0 %370, %v368
    %v372 = vpop.permute.xlu0 %371
    %v374 = vadd.f32 %v367, %v372
    %v375 = vadd.f32 %v374, %v43
    %v376 = vmax.f32 %v375, 0.0
    %377 = vst.msk [vmem:[#allocation2] sm:$0xf] %vm182, %v376
    // Predicated region
    $region30: #{tpu_custom_call.1} parent=1 // pred_check
      _
    $region31: #{tpu_custom_call.1} parent=1 // pred_check_branch
      %379 = sbr.rel (0) target = $region33
    $region32: #{tpu_custom_call.1} parent=1 // pred_region
      %s381 = ssub.s32 64, 64
      %382 = vsyncadd [#allocation3], %s381
      %s384 = sshll.u32 [#allocation2], 4
      %s385 = int_to_ptr.vmem [resolvable:$true] %s384
      %387 = dma.vmem_to_hbm [thread:$0]  %s385, 64, %s7, [#allocation3]
    $region33: #{tpu_custom_call.1} parent=1 // pred_fallthru
      _
    // Predicated region
    $region34: #{tpu_custom_call.1} parent=1 // pred_check
      _
    $region35: #{tpu_custom_call.1} parent=1 // pred_check_branch
      %389 = sbr.rel (0) target = $region37
    $region36: #{tpu_custom_call.1} parent=1 // pred_region
      %390 = dma.done [#allocation3], 64
    $region37: #{tpu_custom_call.1} parent=1 // pred_fallthru
      _
    %391 = vsyncpa [#allocation3], 1

</llo_original>
